<compile_context>
chip_gen: v7x
topology: tpu7x:2x2x1
jax: 0.10.0
libtpu: 0.0.40
codegen_flags: <defaults>
</compile_context>

<pallas_src>
import functools

import jax
import jax.numpy as jnp
from jax import lax
from jax.experimental import pallas as pl
from jax.experimental.pallas import tpu as pltpu


def _round_up(x, m):
    return ((x + m - 1) // m) * m


def _make_fused_ce_kernel(num_heads):
    """Kernel over one batch tile: accumulates per-head CE sums into (1,1) outputs."""

    def kernel(nvalid_ref, *refs):
        logits_refs = refs[:num_heads]               # H x [block_n, C] (native dtype)
        tgt_ref = refs[num_heads]                    # [block_n, 1] int32
        out_refs = refs[num_heads + 1:]              # H x [1, 1] float32 (resident accumulators)

        i = pl.program_id(0)
        block_n = tgt_ref.shape[0]
        c = logits_refs[0].shape[-1]

        @pl.when(i == 0)
        def _init():
            for o in out_refs:
                o[...] = jnp.zeros_like(o)

        tgt = tgt_ref[...]                                           # [block_n, 1]
        n_valid = nvalid_ref[0]                                      # scalar int32 (SMEM)

        # Row-validity mask for the padded tail tile (global row index < N).
        row = i * block_n + lax.broadcasted_iota(jnp.int32, (block_n, 1), 0)
        valid = row < n_valid                                        # [block_n, 1]

        # Target one-hot mask is identical for every head -> hoist out of the loop.
        col = lax.broadcasted_iota(jnp.int32, (block_n, c), 1)
        tmask = col == tgt                                           # [block_n, C]

        for h in range(num_heads):
            logits = logits_refs[h][...].astype(jnp.float32)         # cast in-kernel (bf16 ok)
            picked = jnp.sum(jnp.where(tmask, logits, 0.0),
                             axis=-1, keepdims=True)                 # [block_n, 1]
            m = jnp.max(logits, axis=-1, keepdims=True)
            lse = m + jnp.log(jnp.sum(jnp.exp(logits - m), axis=-1, keepdims=True))
            per_example = jnp.where(valid, lse - picked, 0.0)        # [block_n, 1]
            out_refs[h][...] += jnp.sum(per_example, axis=0, keepdims=True)

        @pl.when(i == pl.num_programs(0) - 1)
        def _finalize():
            inv_n = 1.0 / n_valid.astype(jnp.float32)                # mean over GLOBAL batch
            for o in out_refs:
                o[...] = o[...] * inv_n

    return kernel


def _choose_block_n(n, c, num_heads, itemsize, block_n=None,
                    vmem_budget_bytes=8 * 1024 * 1024):
    # Sublane alignment: 8 rows for 32-bit, 16 for bf16, 32 for 8-bit dtypes.
    row_align = 8 * max(1, 4 // int(itemsize))
    if block_n is None:
        rows = vmem_budget_bytes // max(1, 2 * num_heads * c * int(itemsize))
        block_n = int(min(512, rows))
    block_n = max(row_align, (int(block_n) // row_align) * row_align)
    block_n = min(block_n, _round_up(n, row_align))
    return block_n


def _fused_cross_entropy_losses(logits_list, target, block_n=None):
    """One Pallas call -> [H] per-head mean cross-entropy (H = 1 main + aux heads)."""
    num_heads = len(logits_list)
    n, c = logits_list[0].shape
    for lg in logits_list:
        assert lg.shape == (n, c), "all heads must share the [N, num_classes] shape"
    itemsize = jnp.dtype(logits_list[0].dtype).itemsize

    block_n = _choose_block_n(n, c, num_heads, itemsize, block_n)
    n_pad = _round_up(n, block_n)
    num_tiles = n_pad // block_n

    target = target.astype(jnp.int32)
    if n_pad != n:
        pad_rows = n_pad - n
        logits_list = [jnp.pad(lg, ((0, pad_rows), (0, 0))) for lg in logits_list]
        target = jnp.pad(target, ((0, pad_rows),))
    tgt2d = target.reshape(n_pad, 1)
    n_valid = jnp.array([n], dtype=jnp.int32)        # scalar-prefetch (SMEM)

    logits_spec = pl.BlockSpec((block_n, c), lambda i, nv: (i, 0))
    tgt_spec = pl.BlockSpec((block_n, 1), lambda i, nv: (i, 0))
    out_spec = pl.BlockSpec((1, 1), lambda i, nv: (0, 0))   # resident accumulator

    grid_spec = pltpu.PrefetchScalarGridSpec(
        num_scalar_prefetch=1,
        grid=(num_tiles,),
        in_specs=[logits_spec] * num_heads + [tgt_spec],
        out_specs=[out_spec] * num_heads,
    )

    cost = pl.CostEstimate(
        flops=5 * num_heads * n * c,
        transcendentals=num_heads * n * c,
        bytes_accessed=num_heads * n * c * int(itemsize) + n * 4 + num_heads * 4,
    )

    outs = pl.pallas_call(
        _make_fused_ce_kernel(num_heads),
        out_shape=tuple(jax.ShapeDtypeStruct((1, 1), jnp.float32)
                        for _ in range(num_heads)),
        grid_spec=grid_spec,
        compiler_params=pltpu.CompilerParams(
            dimension_semantics=("arbitrary",),        # batch-tile axis is a reduction
            vmem_limit_bytes=32 * 1024 * 1024,
        ),
        cost_estimate=cost,
    )(n_valid, *logits_list, tgt2d)

    return jnp.concatenate([o.reshape(1) for o in outs], axis=0)    # [H]


@functools.partial(jax.jit, static_argnames=("block_n", "get_aux_loss_aggregated"))
def _forward_impl(all_logits, target, aux_multipliers, *, block_n=None,
                  get_aux_loss_aggregated=False):
    per_head = _fused_cross_entropy_losses(all_logits, target, block_n=block_n)  # [H]
    main_loss = per_head[0]
    aux_weighted = aux_multipliers.astype(jnp.float32) * per_head[1:]
    total = main_loss + jnp.sum(aux_weighted)
    if get_aux_loss_aggregated:
        breakdown = jnp.stack([main_loss, jnp.sum(aux_weighted)])
    else:
        breakdown = jnp.concatenate([main_loss[None], aux_weighted])
    return total, breakdown


class CriterionWithAuxiliaryLossesPallas:
    """Mirror of the PyTorch module's forward() with default optional args."""

    def __init__(self, auxiliary_multipliers, get_aux_loss_aggregated=False, block_n=None):
        if isinstance(auxiliary_multipliers, (int, float)):
            raise ValueError("pass an explicit list of multipliers (one per auxiliary head)")
        self.auxiliary_multipliers = jnp.asarray(list(auxiliary_multipliers),
                                                 dtype=jnp.float32)
        self.num_aux = len(auxiliary_multipliers)
        self.get_aux_loss_aggregated = bool(get_aux_loss_aggregated)
        self.block_n = block_n      # None -> auto-derived from VMEM budget / dtype
        # TODO(synk): report_func / process_mapping left as None (arbitrary Python callbacks).

    def forward(self, inp, target):
        assert isinstance(inp, tuple) and len(inp) == 2
        assert isinstance(inp[1], list)
        assert len(inp[1]) == self.num_aux
        all_logits = (inp[0],) + tuple(inp[1])

        total, breakdown_vec = _forward_impl(
            all_logits, target, self.auxiliary_multipliers,
            block_n=self.block_n,
            get_aux_loss_aggregated=self.get_aux_loss_aggregated)

        # Single device->host transfer for the breakdown (reference uses .item() per scalar).
        breakdown = [float(v) for v in jax.device_get(breakdown_vec)]
        return {"loss": total, "breakdown": breakdown}

    __call__ = forward


def _reference_cross_entropy(logits, target):
    """Plain-JAX reference for sanity checking the kernel."""
    logp = jax.nn.log_softmax(logits.astype(jnp.float32), axis=-1)
    picked = jnp.take_along_axis(logp, target[:, None].astype(jnp.int32), axis=-1)
    return -jnp.mean(picked)


if __name__ == "__main__":
    key = jax.random.PRNGKey(0)
    k_main, k_aux0, k_aux1, k_tgt = jax.random.split(key, 4)

    N, C = 50, 128                    # non-multiple-of-8 batch -> exercises tail masking
    mults = [0.4, 0.2]

    main_logits = jax.random.normal(k_main, (N, C), dtype=jnp.float32)
    aux_logits_0 = jax.random.normal(k_aux0, (N, C), dtype=jnp.float32)
    aux_logits_1 = jax.random.normal(k_aux1, (N, C), dtype=jnp.float32)
    target = jax.random.randint(k_tgt, (N,), 0, C, dtype=jnp.int32)

    # Small tile -> 4 grid steps -> exercises the accumulator / pipeline path.
    criterion = CriterionWithAuxiliaryLossesPallas(mults, block_n=16)
    result = criterion.forward((main_logits, [aux_logits_0, aux_logits_1]), target)
    total = jax.block_until_ready(result["loss"])

    ref_main = _reference_cross_entropy(main_logits, target)
    ref_total = (ref_main
                 + mults[0] * _reference_cross_entropy(aux_logits_0, target)
                 + mults[1] * _reference_cross_entropy(aux_logits_1, target))
    assert jnp.allclose(total, ref_total, rtol=1e-5, atol=1e-5), (float(total), float(ref_total))
    assert len(result["breakdown"]) == 3
    assert abs(result["breakdown"][0] - float(ref_main)) < 1e-4

    # bf16 path: logits stay bf16 in HBM, cast happens inside the kernel.
    bf = jnp.bfloat16
    crit_bf16 = CriterionWithAuxiliaryLossesPallas(mults)   # auto tile size
    res_bf = crit_bf16.forward(
        (main_logits.astype(bf), [aux_logits_0.astype(bf), aux_logits_1.astype(bf)]), target)
    ref_bf = (_reference_cross_entropy(main_logits.astype(bf), target)
              + mults[0] * _reference_cross_entropy(aux_logits_0.astype(bf), target)
              + mults[1] * _reference_cross_entropy(aux_logits_1.astype(bf), target))
    assert jnp.allclose(jax.block_until_ready(res_bf["loss"]), ref_bf, rtol=2e-2, atol=2e-2)

    # Aggregated-breakdown path.
    crit_agg = CriterionWithAuxiliaryLossesPallas(mults, get_aux_loss_aggregated=True,
                                                  block_n=16)
    res_agg = crit_agg.forward((main_logits, [aux_logits_0, aux_logits_1]), target)
    jax.block_until_ready(res_agg["loss"])
    assert len(res_agg["breakdown"]) == 2

    print("KERNEL_OK")
</pallas_src>

<mosaic_0001>
module attributes {stable_mosaic.version = 11 : i64} {
  func.func @kernel(%arg0: i32, %arg1: memref<1xi32, #tpu.memory_space<smem>>, %arg2: memref<16x128xf32, #tpu.memory_space<vmem>>, %arg3: memref<16x128xf32, #tpu.memory_space<vmem>>, %arg4: memref<16x128xf32, #tpu.memory_space<vmem>>, %arg5: memref<16x1xi32, #tpu.memory_space<vmem>>, %arg6: memref<1x1xf32, #tpu.memory_space<vmem>>, %arg7: memref<1x1xf32, #tpu.memory_space<vmem>>, %arg8: memref<1x1xf32, #tpu.memory_space<vmem>>) attributes {dimension_semantics = [#tpu.dimension_semantics<arbitrary>], iteration_bounds = array<i64: 4>, scalar_prefetch = 1 : i64, scratch_operands = 0 : i64, tpu.core_type = #tpu.core_type<tc>, window_params = [{transform_indices = @transform_0, window_bounds = array<i64: 16, 128>}, {transform_indices = @transform_1, window_bounds = array<i64: 16, 128>}, {transform_indices = @transform_2, window_bounds = array<i64: 16, 128>}, {transform_indices = @transform_3, window_bounds = array<i64: 16, 1>}, {pipeline_mode = #tpu.pipeline_mode<synchronous>, transform_indices = @transform_4, window_bounds = array<i64: 1, 1>}, {pipeline_mode = #tpu.pipeline_mode<synchronous>, transform_indices = @transform_5, window_bounds = array<i64: 1, 1>}, {pipeline_mode = #tpu.pipeline_mode<synchronous>, transform_indices = @transform_6, window_bounds = array<i64: 1, 1>}]} {
    %c0_i32 = arith.constant 0 : i32
    %0 = arith.cmpi eq, %arg0, %c0_i32 : i32
    %1 = arith.extui %0 : i1 to i32
    %c0_i32_0 = arith.constant 0 : i32
    %2 = arith.cmpi ne, %1, %c0_i32_0 : i32
    scf.if %2 {
      %cst_39 = arith.constant 0.000000e+00 : f32
      %83 = vector.broadcast %cst_39 : f32 to vector<1x1xf32>
      %c0_40 = arith.constant 0 : index
      %c0_41 = arith.constant 0 : index
      %84 = vector.load %arg6[%c0_40, %c0_41] : memref<1x1xf32, #tpu.memory_space<vmem>>, vector<1x1xf32>
      tpu.vector_store %arg6[%c0_40, %c0_41], %83 {strides = array<i32>} : memref<1x1xf32, #tpu.memory_space<vmem>>, vector<1x1xf32>,
      %cst_42 = arith.constant 0.000000e+00 : f32
      %85 = vector.broadcast %cst_42 : f32 to vector<1x1xf32>
      %c0_43 = arith.constant 0 : index
      %c0_44 = arith.constant 0 : index
      %86 = vector.load %arg7[%c0_43, %c0_44] : memref<1x1xf32, #tpu.memory_space<vmem>>, vector<1x1xf32>
      tpu.vector_store %arg7[%c0_43, %c0_44], %85 {strides = array<i32>} : memref<1x1xf32, #tpu.memory_space<vmem>>, vector<1x1xf32>,
      %cst_45 = arith.constant 0.000000e+00 : f32
      %87 = vector.broadcast %cst_45 : f32 to vector<1x1xf32>
      %c0_46 = arith.constant 0 : index
      %c0_47 = arith.constant 0 : index
      %88 = vector.load %arg8[%c0_46, %c0_47] : memref<1x1xf32, #tpu.memory_space<vmem>>, vector<1x1xf32>
      tpu.vector_store %arg8[%c0_46, %c0_47], %87 {strides = array<i32>} : memref<1x1xf32, #tpu.memory_space<vmem>>, vector<1x1xf32>,
    } else {
    }
    %c0 = arith.constant 0 : index
    %c0_1 = arith.constant 0 : index
    %3 = vector.load %arg5[%c0, %c0_1] : memref<16x1xi32, #tpu.memory_space<vmem>>, vector<16x1xi32>
    %c0_2 = arith.constant 0 : index
    %4 = memref.load %arg1[%c0_2] : memref<1xi32, #tpu.memory_space<smem>>
    %c16_i32 = arith.constant 16 : i32
    %5 = arith.muli %arg0, %c16_i32 : i32
    %6 = tpu.iota {dimensions = array<i32: 0>} : vector<16x1xi32>
    %7 = vector.broadcast %5 : i32 to vector<16x1xi32>
    %8 = arith.addi %7, %6 : vector<16x1xi32>
    %9 = vector.broadcast %4 : i32 to vector<16x1xi32>
    %10 = arith.cmpi slt, %8, %9 : vector<16x1xi32>
    %11 = tpu.iota {dimensions = array<i32: 1>} : vector<16x128xi32>
    %12 = vector.broadcast %3 : vector<16x1xi32> to vector<16x128xi32>
    %13 = arith.cmpi eq, %11, %12 : vector<16x128xi32>
    %c0_3 = arith.constant 0 : index
    %c0_4 = arith.constant 0 : index
    %14 = vector.load %arg2[%c0_3, %c0_4] : memref<16x128xf32, #tpu.memory_space<vmem>>, vector<16x128xf32>
    %cst = arith.constant 0.000000e+00 : f32
    %15 = vector.broadcast %cst : f32 to vector<16x128xf32>
    %16 = arith.select %13, %14, %15 : vector<16x128xi1>, vector<16x128xf32>
    %cst_5 = arith.constant dense<0.000000e+00> : vector<16xf32>
    %17 = vector.multi_reduction <add>, %16, %cst_5 [1] : vector<16x128xf32> to vector<16xf32>
    %18 = vector.shape_cast %17 : vector<16xf32> to vector<16x1xf32>
    %cst_6 = arith.constant dense<0xFF800000> : vector<16xf32>
    %19 = vector.multi_reduction <maximumf>, %14, %cst_6 [1] : vector<16x128xf32> to vector<16xf32>
    %20 = vector.shape_cast %19 : vector<16xf32> to vector<16x1xf32>
    %21 = vector.broadcast %20 : vector<16x1xf32> to vector<16x128xf32>
    %22 = arith.subf %14, %21 : vector<16x128xf32>
    %23 = math.exp %22 : vector<16x128xf32>
    %cst_7 = arith.constant dense<0.000000e+00> : vector<16xf32>
    %24 = vector.multi_reduction <add>, %23, %cst_7 [1] : vector<16x128xf32> to vector<16xf32>
    %25 = vector.shape_cast %24 : vector<16xf32> to vector<16x1xf32>
    %26 = math.log %25 : vector<16x1xf32>
    %27 = arith.addf %20, %26 : vector<16x1xf32>
    %28 = arith.subf %27, %18 : vector<16x1xf32>
    %cst_8 = arith.constant 0.000000e+00 : f32
    %29 = vector.broadcast %cst_8 : f32 to vector<16x1xf32>
    %30 = arith.select %10, %28, %29 : vector<16x1xi1>, vector<16x1xf32>
    %c0_9 = arith.constant 0 : index
    %c0_10 = arith.constant 0 : index
    %31 = vector.load %arg6[%c0_9, %c0_10] : memref<1x1xf32, #tpu.memory_space<vmem>>, vector<1x1xf32>
    %cst_11 = arith.constant dense<0.000000e+00> : vector<1xf32>
    %32 = vector.multi_reduction <add>, %30, %cst_11 [0] : vector<16x1xf32> to vector<1xf32>
    %33 = vector.shape_cast %32 : vector<1xf32> to vector<1x1xf32>
    %34 = arith.addf %31, %33 : vector<1x1xf32>
    %c0_12 = arith.constant 0 : index
    %c0_13 = arith.constant 0 : index
    %35 = vector.load %arg6[%c0_12, %c0_13] : memref<1x1xf32, #tpu.memory_space<vmem>>, vector<1x1xf32>
    tpu.vector_store %arg6[%c0_12, %c0_13], %34 {strides = array<i32>} : memref<1x1xf32, #tpu.memory_space<vmem>>, vector<1x1xf32>,
    %c0_14 = arith.constant 0 : index
    %c0_15 = arith.constant 0 : index
    %36 = vector.load %arg3[%c0_14, %c0_15] : memref<16x128xf32, #tpu.memory_space<vmem>>, vector<16x128xf32>
    %cst_16 = arith.constant 0.000000e+00 : f32
    %37 = vector.broadcast %cst_16 : f32 to vector<16x128xf32>
    %38 = arith.select %13, %36, %37 : vector<16x128xi1>, vector<16x128xf32>
    %cst_17 = arith.constant dense<0.000000e+00> : vector<16xf32>
    %39 = vector.multi_reduction <add>, %38, %cst_17 [1] : vector<16x128xf32> to vector<16xf32>
    %40 = vector.shape_cast %39 : vector<16xf32> to vector<16x1xf32>
    %cst_18 = arith.constant dense<0xFF800000> : vector<16xf32>
    %41 = vector.multi_reduction <maximumf>, %36, %cst_18 [1] : vector<16x128xf32> to vector<16xf32>
    %42 = vector.shape_cast %41 : vector<16xf32> to vector<16x1xf32>
    %43 = vector.broadcast %42 : vector<16x1xf32> to vector<16x128xf32>
    %44 = arith.subf %36, %43 : vector<16x128xf32>
    %45 = math.exp %44 : vector<16x128xf32>
    %cst_19 = arith.constant dense<0.000000e+00> : vector<16xf32>
    %46 = vector.multi_reduction <add>, %45, %cst_19 [1] : vector<16x128xf32> to vector<16xf32>
    %47 = vector.shape_cast %46 : vector<16xf32> to vector<16x1xf32>
    %48 = math.log %47 : vector<16x1xf32>
    %49 = arith.addf %42, %48 : vector<16x1xf32>
    %50 = arith.subf %49, %40 : vector<16x1xf32>
    %cst_20 = arith.constant 0.000000e+00 : f32
    %51 = vector.broadcast %cst_20 : f32 to vector<16x1xf32>
    %52 = arith.select %10, %50, %51 : vector<16x1xi1>, vector<16x1xf32>
    %c0_21 = arith.constant 0 : index
    %c0_22 = arith.constant 0 : index
    %53 = vector.load %arg7[%c0_21, %c0_22] : memref<1x1xf32, #tpu.memory_space<vmem>>, vector<1x1xf32>
    %cst_23 = arith.constant dense<0.000000e+00> : vector<1xf32>
    %54 = vector.multi_reduction <add>, %52, %cst_23 [0] : vector<16x1xf32> to vector<1xf32>
    %55 = vector.shape_cast %54 : vector<1xf32> to vector<1x1xf32>
    %56 = arith.addf %53, %55 : vector<1x1xf32>
    %c0_24 = arith.constant 0 : index
    %c0_25 = arith.constant 0 : index
    %57 = vector.load %arg7[%c0_24, %c0_25] : memref<1x1xf32, #tpu.memory_space<vmem>>, vector<1x1xf32>
    tpu.vector_store %arg7[%c0_24, %c0_25], %56 {strides = array<i32>} : memref<1x1xf32, #tpu.memory_space<vmem>>, vector<1x1xf32>,
    %c0_26 = arith.constant 0 : index
    %c0_27 = arith.constant 0 : index
    %58 = vector.load %arg4[%c0_26, %c0_27] : memref<16x128xf32, #tpu.memory_space<vmem>>, vector<16x128xf32>
    %cst_28 = arith.constant 0.000000e+00 : f32
    %59 = vector.broadcast %cst_28 : f32 to vector<16x128xf32>
    %60 = arith.select %13, %58, %59 : vector<16x128xi1>, vector<16x128xf32>
    %cst_29 = arith.constant dense<0.000000e+00> : vector<16xf32>
    %61 = vector.multi_reduction <add>, %60, %cst_29 [1] : vector<16x128xf32> to vector<16xf32>
    %62 = vector.shape_cast %61 : vector<16xf32> to vector<16x1xf32>
    %cst_30 = arith.constant dense<0xFF800000> : vector<16xf32>
    %63 = vector.multi_reduction <maximumf>, %58, %cst_30 [1] : vector<16x128xf32> to vector<16xf32>
    %64 = vector.shape_cast %63 : vector<16xf32> to vector<16x1xf32>
    %65 = vector.broadcast %64 : vector<16x1xf32> to vector<16x128xf32>
    %66 = arith.subf %58, %65 : vector<16x128xf32>
    %67 = math.exp %66 : vector<16x128xf32>
    %cst_31 = arith.constant dense<0.000000e+00> : vector<16xf32>
    %68 = vector.multi_reduction <add>, %67, %cst_31 [1] : vector<16x128xf32> to vector<16xf32>
    %69 = vector.shape_cast %68 : vector<16xf32> to vector<16x1xf32>
    %70 = math.log %69 : vector<16x1xf32>
    %71 = arith.addf %64, %70 : vector<16x1xf32>
    %72 = arith.subf %71, %62 : vector<16x1xf32>
    %cst_32 = arith.constant 0.000000e+00 : f32
    %73 = vector.broadcast %cst_32 : f32 to vector<16x1xf32>
    %74 = arith.select %10, %72, %73 : vector<16x1xi1>, vector<16x1xf32>
    %c0_33 = arith.constant 0 : index
    %c0_34 = arith.constant 0 : index
    %75 = vector.load %arg8[%c0_33, %c0_34] : memref<1x1xf32, #tpu.memory_space<vmem>>, vector<1x1xf32>
    %cst_35 = arith.constant dense<0.000000e+00> : vector<1xf32>
    %76 = vector.multi_reduction <add>, %74, %cst_35 [0] : vector<16x1xf32> to vector<1xf32>
    %77 = vector.shape_cast %76 : vector<1xf32> to vector<1x1xf32>
    %78 = arith.addf %75, %77 : vector<1x1xf32>
    %c0_36 = arith.constant 0 : index
    %c0_37 = arith.constant 0 : index
    %79 = vector.load %arg8[%c0_36, %c0_37] : memref<1x1xf32, #tpu.memory_space<vmem>>, vector<1x1xf32>
    tpu.vector_store %arg8[%c0_36, %c0_37], %78 {strides = array<i32>} : memref<1x1xf32, #tpu.memory_space<vmem>>, vector<1x1xf32>,
    %c3_i32 = arith.constant 3 : i32
    %80 = arith.cmpi eq, %arg0, %c3_i32 : i32
    %81 = arith.extui %80 : i1 to i32
    %c0_i32_38 = arith.constant 0 : i32
    %82 = arith.cmpi ne, %81, %c0_i32_38 : i32
    scf.if %82 {
      %83 = arith.sitofp %4 : i32 to f32
      %cst_39 = arith.constant 1.000000e+00 : f32
      %84 = arith.divf %cst_39, %83 : f32
      %c0_40 = arith.constant 0 : index
      %c0_41 = arith.constant 0 : index
      %85 = vector.load %arg6[%c0_40, %c0_41] : memref<1x1xf32, #tpu.memory_space<vmem>>, vector<1x1xf32>
      %86 = vector.broadcast %84 : f32 to vector<1x1xf32>
      %87 = arith.mulf %85, %86 : vector<1x1xf32>
      %c0_42 = arith.constant 0 : index
      %c0_43 = arith.constant 0 : index
      %88 = vector.load %arg6[%c0_42, %c0_43] : memref<1x1xf32, #tpu.memory_space<vmem>>, vector<1x1xf32>
      tpu.vector_store %arg6[%c0_42, %c0_43], %87 {strides = array<i32>} : memref<1x1xf32, #tpu.memory_space<vmem>>, vector<1x1xf32>,
      %c0_44 = arith.constant 0 : index
      %c0_45 = arith.constant 0 : index
      %89 = vector.load %arg7[%c0_44, %c0_45] : memref<1x1xf32, #tpu.memory_space<vmem>>, vector<1x1xf32>
      %90 = vector.broadcast %84 : f32 to vector<1x1xf32>
      %91 = arith.mulf %89, %90 : vector<1x1xf32>
      %c0_46 = arith.constant 0 : index
      %c0_47 = arith.constant 0 : index
      %92 = vector.load %arg7[%c0_46, %c0_47] : memref<1x1xf32, #tpu.memory_space<vmem>>, vector<1x1xf32>
      tpu.vector_store %arg7[%c0_46, %c0_47], %91 {strides = array<i32>} : memref<1x1xf32, #tpu.memory_space<vmem>>, vector<1x1xf32>,
      %c0_48 = arith.constant 0 : index
      %c0_49 = arith.constant 0 : index
      %93 = vector.load %arg8[%c0_48, %c0_49] : memref<1x1xf32, #tpu.memory_space<vmem>>, vector<1x1xf32>
      %94 = vector.broadcast %84 : f32 to vector<1x1xf32>
      %95 = arith.mulf %93, %94 : vector<1x1xf32>
      %c0_50 = arith.constant 0 : index
      %c0_51 = arith.constant 0 : index
      %96 = vector.load %arg8[%c0_50, %c0_51] : memref<1x1xf32, #tpu.memory_space<vmem>>, vector<1x1xf32>
      tpu.vector_store %arg8[%c0_50, %c0_51], %95 {strides = array<i32>} : memref<1x1xf32, #tpu.memory_space<vmem>>, vector<1x1xf32>,
    } else {
    }
    return
  }
  func.func @transform_0(%arg0: i32, %arg1: memref<1xi32, #tpu.memory_space<smem>>) -> (i32, i32) {
    %c0_i32 = arith.constant 0 : i32
    %c0_i32_0 = arith.constant 0 : i32
    return %arg0, %c0_i32 : i32, i32
  }
  func.func @transform_1(%arg0: i32, %arg1: memref<1xi32, #tpu.memory_space<smem>>) -> (i32, i32) {
    %c0_i32 = arith.constant 0 : i32
    %c0_i32_0 = arith.constant 0 : i32
    return %arg0, %c0_i32 : i32, i32
  }
  func.func @transform_2(%arg0: i32, %arg1: memref<1xi32, #tpu.memory_space<smem>>) -> (i32, i32) {
    %c0_i32 = arith.constant 0 : i32
    %c0_i32_0 = arith.constant 0 : i32
    return %arg0, %c0_i32 : i32, i32
  }
  func.func @transform_3(%arg0: i32, %arg1: memref<1xi32, #tpu.memory_space<smem>>) -> (i32, i32) {
    %c0_i32 = arith.constant 0 : i32
    %c0_i32_0 = arith.constant 0 : i32
    return %arg0, %c0_i32 : i32, i32
  }
  func.func @transform_4(%arg0: i32, %arg1: memref<1xi32, #tpu.memory_space<smem>>) -> (i32, i32) {
    %c0_i32 = arith.constant 0 : i32
    %c0_i32_0 = arith.constant 0 : i32
    %c0_i32_1 = arith.constant 0 : i32
    return %c0_i32, %c0_i32_0 : i32, i32
  }
  func.func @transform_5(%arg0: i32, %arg1: memref<1xi32, #tpu.memory_space<smem>>) -> (i32, i32) {
    %c0_i32 = arith.constant 0 : i32
    %c0_i32_0 = arith.constant 0 : i32
    %c0_i32_1 = arith.constant 0 : i32
    return %c0_i32, %c0_i32_0 : i32, i32
  }
  func.func @transform_6(%arg0: i32, %arg1: memref<1xi32, #tpu.memory_space<smem>>) -> (i32, i32) {
    %c0_i32 = arith.constant 0 : i32
    %c0_i32_0 = arith.constant 0 : i32
    %c0_i32_1 = arith.constant 0 : i32
    return %c0_i32, %c0_i32_0 : i32, i32
  }
}

</mosaic_0001>

<llo_original>
// kernel: _forward_impl.1
$region0: #{_forward_impl.1}
  #allocation0 [shape = 'u32[]', space=smem, size = 0x4, offset = 0x4, fixed_abs, tag = 'smem constant byte address 0x4 - core index']
  #allocation1 [shape = 'u32[144,128]{1,0:T(1,128)}', space=vmem, size = 0x12000, scoped, tag = 'internal scratch']
  #allocation2 [shape = 's32[1]{0}', space=sflag, size = 0x4, scoped, tag = 'scoped memory for _forward_impl.1']
  #allocation3 [shape = 's32[1]{0:T(128)S(6)}', space=smem, size = 0x200, scoped, tag = 'prefetched SMEM operand 0']
  %s0 = inlined_call_operand.<no memory space> [shape: s32[1], index: 0, kind: input, shape index: {}]
  %s1 = inlined_call_operand.vmem [shape: f32[64,128], index: 1, kind: input, shape index: {}]
  %s2 = inlined_call_operand.vmem [shape: f32[64,128], index: 2, kind: input, shape index: {}]
  %s3 = inlined_call_operand.vmem [shape: f32[64,128], index: 3, kind: input, shape index: {}]
  %s4 = inlined_call_operand.vmem [shape: s32[64,1], index: 4, kind: input, shape index: {}]
  %s5 = inlined_call_operand.hbm [shape: f32[1,1], index: 5, kind: output, shape index: {0}]
  %s6 = inlined_call_operand.hbm [shape: f32[1,1], index: 6, kind: output, shape index: {1}]
  %s7 = inlined_call_operand.hbm [shape: f32[1,1], index: 7, kind: output, shape index: {2}]
  %8 = xla_tuple %s5, %s6, %s7
  %s9 = sld [smem:[#allocation0]]
  $region73: #{_forward_impl.1} parent=0
    _
  %s11 = ssub.s32 1, %s9
  %s12 = scalar_select 0, %s11, %s9
  %13 = sst [smem:[#allocation3]] %s0
  $region1: #{_forward_impl.1} parent=0
    #allocation4 [shape = 'u8[512]{0}', space=vmem, size = 0x400, scoped, tag = 'output window, operand 0, single buffered']
    #allocation5 [shape = 's32[2]{0}', space=sflag, size = 0x8, scoped, tag = 'scoped memory for _forward_impl.1']
    #allocation6 [shape = 'u8[512]{0}', space=vmem, size = 0x400, scoped, tag = 'output window, operand 1, single buffered']
    #allocation7 [shape = 's32[1]{0}', space=sflag, size = 0x4, scoped, tag = 'scoped memory for _forward_impl.1']
    #allocation8 [shape = 'u8[512]{0}', space=vmem, size = 0x400, scoped, tag = 'output window, operand 2, single buffered']
    %14 = vsyncpa [#allocation5], 0
    %15 = vsyncpa [#allocation7], 0
    loop: start=0, step=1, limit=6
    $region2: #{_forward_impl.1} parent=1 // loop_pre_header
      _
    $region3: #{_forward_impl.1} parent=1 // loop_header
      %s17 = sphi 0, %s21
      %p18 = scmp.ge.s32.totalorder %s17, 6
      %s27 = sphi 0, %s29
      %s30 = sphi 0, %s27
      %s31 = sphi 0, %s30
      %s47 = sphi 0, %s31
      %s53 = sphi 0, %s55
      %s56 = sphi 0, %s53
      %s57 = sphi 0, %s56
      %s73 = sphi 0, %s57
      %s79 = sphi 0, %s81
      %s82 = sphi 0, %s79
      %s83 = sphi 0, %s82
      %s99 = sphi 0, %s83
      %s105 = sphi 0, %s107
      %s108 = sphi 0, %s105
      %s109 = sphi 0, %s108
      %s125 = sphi 0, %s109
      %s129 = sphi 0, %s129
      %s131 = sphi 0, %s129
      %s132 = sphi 0, %s131
      %s146 = sphi 0, %s132
      %s150 = sphi 0, %s150
      %s152 = sphi 0, %s150
      %s153 = sphi 0, %s152
      %s167 = sphi 0, %s153
      %s171 = sphi 0, %s171
      %s173 = sphi 0, %s171
      %s174 = sphi 0, %s173
      %s188 = sphi 0, %s174
    $region4: #{_forward_impl.1} parent=1 // loop_header_branch
      %20 = sbr.rel (%p18) target = $region8
    $region5: #{_forward_impl.1} parent=1 // loop_body
      %s22 = ssub.s32 %s17, 1
      %s23 = ssub.s32 %s17, 2
      %s24 = sadd.s32 %s17, 1
      %s25 = ssub.s32 %s17, %s24
      %p26 = scmp.eq.s32.totalorder %s25, 0
      %s28 = sadd.s32 %s27, 1
      %s29 = scalar_select %p26, %s27, %s28
      %p32 = pneg %p26
      %p33 = scmp.eq.s32.totalorder %s17, 3
      %p34 = por %p32, %p33
      %p35 = scmp.ne.s32.totalorder %s27, %s30
      %p36 = scmp.eq.s32.totalorder %s17, 0
      %p37 = por %p35, %p36
      %p38 = scmp.ne.s32.totalorder %s27, %s30
      %p39 = scmp.eq.s32.totalorder %s22, 3
      %p40 = por %p38, %p39
      %p41 = scmp.ne.s32.totalorder %s30, %s31
      %p42 = scmp.eq.s32.totalorder %s22, 0
      %p43 = por %p41, %p42
      %p44 = scmp.ne.s32.totalorder %s30, %s31
      %p45 = scmp.eq.s32.totalorder %s23, 3
      %p46 = por %p44, %p45
      %p48 = scmp.ne.s32.totalorder %s31, %s47
      %p49 = scmp.eq.s32.totalorder %s23, 0
      %p50 = por %p48, %p49
      %s51 = ssub.s32 %s17, %s24
      %p52 = scmp.eq.s32.totalorder %s51, 0
      %s54 = sadd.s32 %s53, 1
      %s55 = scalar_select %p52, %s53, %s54
      %p58 = pneg %p52
      %p59 = scmp.eq.s32.totalorder %s17, 3
      %p60 = por %p58, %p59
      %p61 = scmp.ne.s32.totalorder %s53, %s56
      %p62 = scmp.eq.s32.totalorder %s17, 0
      %p63 = por %p61, %p62
      %p64 = scmp.ne.s32.totalorder %s53, %s56
      %p65 = scmp.eq.s32.totalorder %s22, 3
      %p66 = por %p64, %p65
      %p67 = scmp.ne.s32.totalorder %s56, %s57
      %p68 = scmp.eq.s32.totalorder %s22, 0
      %p69 = por %p67, %p68
      %p70 = scmp.ne.s32.totalorder %s56, %s57
      %p71 = scmp.eq.s32.totalorder %s23, 3
      %p72 = por %p70, %p71
      %p74 = scmp.ne.s32.totalorder %s57, %s73
      %p75 = scmp.eq.s32.totalorder %s23, 0
      %p76 = por %p74, %p75
      %s77 = ssub.s32 %s17, %s24
      %p78 = scmp.eq.s32.totalorder %s77, 0
      %s80 = sadd.s32 %s79, 1
      %s81 = scalar_select %p78, %s79, %s80
      %p84 = pneg %p78
      %p85 = scmp.eq.s32.totalorder %s17, 3
      %p86 = por %p84, %p85
      %p87 = scmp.ne.s32.totalorder %s79, %s82
      %p88 = scmp.eq.s32.totalorder %s17, 0
      %p89 = por %p87, %p88
      %p90 = scmp.ne.s32.totalorder %s79, %s82
      %p91 = scmp.eq.s32.totalorder %s22, 3
      %p92 = por %p90, %p91
      %p93 = scmp.ne.s32.totalorder %s82, %s83
      %p94 = scmp.eq.s32.totalorder %s22, 0
      %p95 = por %p93, %p94
      %p96 = scmp.ne.s32.totalorder %s82, %s83
      %p97 = scmp.eq.s32.totalorder %s23, 3
      %p98 = por %p96, %p97
      %p100 = scmp.ne.s32.totalorder %s83, %s99
      %p101 = scmp.eq.s32.totalorder %s23, 0
      %p102 = por %p100, %p101
      %s103 = ssub.s32 %s17, %s24
      %p104 = scmp.eq.s32.totalorder %s103, 0
      %s106 = sadd.s32 %s105, 1
      %s107 = scalar_select %p104, %s105, %s106
      %p110 = pneg %p104
      %p111 = scmp.eq.s32.totalorder %s17, 3
      %p112 = por %p110, %p111
      %p113 = scmp.ne.s32.totalorder %s105, %s108
      %p114 = scmp.eq.s32.totalorder %s17, 0
      %p115 = por %p113, %p114
      %p116 = scmp.ne.s32.totalorder %s105, %s108
      %p117 = scmp.eq.s32.totalorder %s22, 3
      %p118 = por %p116, %p117
      %p119 = scmp.ne.s32.totalorder %s108, %s109
      %p120 = scmp.eq.s32.totalorder %s22, 0
      %p121 = por %p119, %p120
      %p122 = scmp.ne.s32.totalorder %s108, %s109
      %p123 = scmp.eq.s32.totalorder %s23, 3
      %p124 = por %p122, %p123
      %p126 = scmp.ne.s32.totalorder %s109, %s125
      %p127 = scmp.eq.s32.totalorder %s23, 0
      %p128 = por %p126, %p127
      %s130 = sadd.s32 %s129, 1
      %p133 = scmp.eq.s32.totalorder %s17, 3
      %p134 = scmp.ne.s32.totalorder %s129, %s131
      %p135 = scmp.eq.s32.totalorder %s17, 0
      %p136 = por %p134, %p135
      %p137 = scmp.ne.s32.totalorder %s129, %s131
      %p138 = scmp.eq.s32.totalorder %s22, 3
      %p139 = por %p137, %p138
      %p140 = scmp.ne.s32.totalorder %s131, %s132
      %p141 = scmp.eq.s32.totalorder %s22, 0
      %p142 = por %p140, %p141
      %p143 = scmp.ne.s32.totalorder %s131, %s132
      %p144 = scmp.eq.s32.totalorder %s23, 3
      %p145 = por %p143, %p144
      %p147 = scmp.ne.s32.totalorder %s132, %s146
      %p148 = scmp.eq.s32.totalorder %s23, 0
      %p149 = por %p147, %p148
      %s151 = sadd.s32 %s150, 1
      %p154 = scmp.eq.s32.totalorder %s17, 3
      %p155 = scmp.ne.s32.totalorder %s150, %s152
      %p156 = scmp.eq.s32.totalorder %s17, 0
      %p157 = por %p155, %p156
      %p158 = scmp.ne.s32.totalorder %s150, %s152
      %p159 = scmp.eq.s32.totalorder %s22, 3
      %p160 = por %p158, %p159
      %p161 = scmp.ne.s32.totalorder %s152, %s153
      %p162 = scmp.eq.s32.totalorder %s22, 0
      %p163 = por %p161, %p162
      %p164 = scmp.ne.s32.totalorder %s152, %s153
      %p165 = scmp.eq.s32.totalorder %s23, 3
      %p166 = por %p164, %p165
      %p168 = scmp.ne.s32.totalorder %s153, %s167
      %p169 = scmp.eq.s32.totalorder %s23, 0
      %p170 = por %p168, %p169
      %s172 = sadd.s32 %s171, 1
      %p175 = scmp.eq.s32.totalorder %s17, 3
      %p176 = scmp.ne.s32.totalorder %s171, %s173
      %p177 = scmp.eq.s32.totalorder %s17, 0
      %p178 = por %p176, %p177
      %p179 = scmp.ne.s32.totalorder %s171, %s173
      %p180 = scmp.eq.s32.totalorder %s22, 3
      %p181 = por %p179, %p180
      %p182 = scmp.ne.s32.totalorder %s173, %s174
      %p183 = scmp.eq.s32.totalorder %s22, 0
      %p184 = por %p182, %p183
      %p185 = scmp.ne.s32.totalorder %s173, %s174
      %p186 = scmp.eq.s32.totalorder %s23, 3
      %p187 = por %p185, %p186
      %p189 = scmp.ne.s32.totalorder %s174, %s188
      %p190 = scmp.eq.s32.totalorder %s23, 0
      %p191 = por %p189, %p190
      %p192 = scmp.le.s32.totalorder 1, %s17
      %p193 = scmp.lt.s32.totalorder %s17, 5
      %p194 = pnand %p192, %p193
      %p195 = pneg %p194
      // Predicated region
      $region9: #{_forward_impl.1} parent=5 // pred_check
        _
      $region10: #{_forward_impl.1} parent=5 // pred_check_branch
        %197 = sbr.rel (%p194) target = $region12
      $region11: #{_forward_impl.1} parent=5 // pred_region
        %s198 = ssub.s32 %s17, 1
      $region12: #{_forward_impl.1} parent=5 // pred_fallthru
        _
      %p199 = scmp.lt.s32.totalorder %s17, 4
      // Predicated region
      $region13: #{_forward_impl.1} parent=5 // pred_check
        %p200 = pneg %p199
      $region14: #{_forward_impl.1} parent=5 // pred_check_branch
        %202 = sbr.rel (%p200) target = $region16
      $region15: #{_forward_impl.1} parent=5 // pred_region
        // Predicated region
        $region17: #{_forward_impl.1} parent=15 // pred_check
          %p203 = pneg %p37
        $region18: #{_forward_impl.1} parent=15 // pred_check_branch
          %205 = sbr.rel (%p203) target = $region20
        $region19: #{_forward_impl.1} parent=15 // pred_region
          %s206 = smul.u32 2, %s17
          %p207 = scmp.lt.s32.totalorder %s206, 7
          %s208 = scalar_select %p207, %s206, 7
          %s209 = smul.addr %s208, 8
          %s210 = scalar_lea.vmem %s1, %s209
          %s211 = smul.u32 2, %s17
        $region20: #{_forward_impl.1} parent=15 // pred_fallthru
          _
        // Predicated region
        $region21: #{_forward_impl.1} parent=15 // pred_check
          %p212 = pneg %p63
        $region22: #{_forward_impl.1} parent=15 // pred_check_branch
          %214 = sbr.rel (%p212) target = $region24
        $region23: #{_forward_impl.1} parent=15 // pred_region
          %s215 = smul.u32 2, %s17
          %p216 = scmp.lt.s32.totalorder %s215, 7
          %s217 = scalar_select %p216, %s215, 7
          %s218 = smul.addr %s217, 8
          %s219 = scalar_lea.vmem %s2, %s218
          %s220 = smul.u32 2, %s17
        $region24: #{_forward_impl.1} parent=15 // pred_fallthru
          _
        // Predicated region
        $region25: #{_forward_impl.1} parent=15 // pred_check
          %p221 = pneg %p89
        $region26: #{_forward_impl.1} parent=15 // pred_check_branch
          %223 = sbr.rel (%p221) target = $region28
        $region27: #{_forward_impl.1} parent=15 // pred_region
          %s224 = smul.u32 2, %s17
          %p225 = scmp.lt.s32.totalorder %s224, 7
          %s226 = scalar_select %p225, %s224, 7
          %s227 = smul.addr %s226, 8
          %s228 = scalar_lea.vmem %s3, %s227
          %s229 = smul.u32 2, %s17
        $region28: #{_forward_impl.1} parent=15 // pred_fallthru
          _
        // Predicated region
        $region29: #{_forward_impl.1} parent=15 // pred_check
          %p230 = pneg %p115
        $region30: #{_forward_impl.1} parent=15 // pred_check_branch
          %232 = sbr.rel (%p230) target = $region32
        $region31: #{_forward_impl.1} parent=15 // pred_region
          %s233 = smul.u32 2, %s17
          %p234 = scmp.lt.s32.totalorder %s233, 7
          %s235 = scalar_select %p234, %s233, 7
          %s236 = smul.addr %s235, 8
          %s237 = scalar_lea.vmem %s4, %s236
          %s238 = smul.u32 2, %s17
        $region32: #{_forward_impl.1} parent=15 // pred_fallthru
          _
      $region16: #{_forward_impl.1} parent=5 // pred_fallthru
        _
      %p239 = scmp.le.s32.totalorder 1, %s17
      %p240 = scmp.lt.s32.totalorder %s17, 5
      %p241 = pnand %p239, %p240
      %p242 = pneg %p241
      // Predicated region
      $region33: #{_forward_impl.1} parent=5 // pred_check
        _
      $region34: #{_forward_impl.1} parent=5 // pred_check_branch
        %244 = sbr.rel (%p241) target = $region36
      $region35: #{_forward_impl.1} parent=5 // pred_region
        %s245 = ssub.s32 %s17, 1
        %s246 = smul.u32 2, %s22
        %p247 = scmp.lt.s32.totalorder %s246, 7
        %s248 = scalar_select %p247, %s246, 7
        %s249 = smul.addr %s248, 8
        %s250 = scalar_lea.vmem %s1, %s249
        %p251 = pneg %p43
        %p252 = pneg %p40
        %s253 = smul.u32 2, %s22
        %p254 = scmp.lt.s32.totalorder %s253, 7
        %s255 = scalar_select %p254, %s253, 7
        %s256 = smul.addr %s255, 8
        %s257 = scalar_lea.vmem %s2, %s256
        %p258 = pneg %p69
        %p259 = pneg %p66
        %s260 = smul.u32 2, %s22
        %p261 = scmp.lt.s32.totalorder %s260, 7
        %s262 = scalar_select %p261, %s260, 7
        %s263 = smul.addr %s262, 8
        %s264 = scalar_lea.vmem %s3, %s263
        %p265 = pneg %p95
        %p266 = pneg %p92
        %s267 = smul.u32 2, %s22
        %p268 = scmp.lt.s32.totalorder %s267, 7
        %s269 = scalar_select %p268, %s267, 7
        %s270 = smul.addr %s269, 8
        %s271 = scalar_lea.vmem %s4, %s270
        %p272 = pneg %p121
        %p273 = pneg %p118
        %p274 = pneg %p142
        %p275 = pneg %p139
        %p276 = pneg %p163
        %p277 = pneg %p160
        %p278 = pneg %p184
        %p279 = pneg %p181
        %s280 = smul.u32 2, %s22
        %p281 = scmp.lt.s32.totalorder %s280, 7
        %s282 = scalar_select %p281, %s280, 7
        %s283 = smul.addr %s282, 8
        %s284 = scalar_lea.vmem %s1, %s283
        %s285 = smul.u32 2, %s22
        %s286 = smul.u32 2, %s22
        %p287 = scmp.lt.s32.totalorder %s286, 7
        %s288 = scalar_select %p287, %s286, 7
        %s289 = smul.addr %s288, 8
        %s290 = scalar_lea.vmem %s2, %s289
        %s291 = smul.u32 2, %s22
        %s292 = smul.u32 2, %s22
        %p293 = scmp.lt.s32.totalorder %s292, 7
        %s294 = scalar_select %p293, %s292, 7
        %s295 = smul.addr %s294, 8
        %s296 = scalar_lea.vmem %s3, %s295
        %s297 = smul.u32 2, %s22
        %s298 = smul.u32 2, %s22
        %p299 = scmp.lt.s32.totalorder %s298, 7
        %s300 = scalar_select %p299, %s298, 7
        %s301 = smul.addr %s300, 8
        %s302 = scalar_lea.vmem %s4, %s301
        %s303 = smul.u32 2, %s22
        %p304 = scmp.eq.s32.totalorder %s22, 0
        // Predicated region
        $region37: #{_forward_impl.1} parent=35 // pred_check
          %p305 = pneg %p304
        $region38: #{_forward_impl.1} parent=35 // pred_check_branch
          %307 = sbr.rel (%p305) target = $region40
        $region39: #{_forward_impl.1} parent=35 // pred_region
          %vm308 = vcmask 0
          %309 = vst.msk [vmem:[#allocation4] sm:$0x1] %vm308, 0.0
          %310 = vst.msk [vmem:[#allocation6] sm:$0x1] %vm308, 0.0
          %311 = vst.msk [vmem:[#allocation8] sm:$0x1] %vm308, 0.0
        $region40: #{_forward_impl.1} parent=35 // pred_fallthru
          _
        %v312 = vld [vmem:[%s302] sm:$0xff]
        %v313 = vld [vmem:[%s302 + $0x8] sm:$0xff]
        %s314 = sld [smem:[#allocation3]]
        %s315 = smul.u32 %s22, 16
        %v316 = vlaneseq
        %v317 = vshrl.u32 %v316, 7
        %v318 = vadd.s32 %v317, 8
        %v319 = vstv %s315
        %v320 = vadd.s32 %v319, %v317
        %v321 = vadd.s32 %v319, %v318
        %v322 = vstv %s314
        %vm323 = vcmp.lt.s32.totalorder %v320, %v322
        %vm324 = vcmp.lt.s32.totalorder %v321, %v322
        %v325 = vlaneseq
        %v326 = vand.u32 %v325, 127
        %327 = vset.pattern.permute.xlu0 0
        %328 = vperm.xlu0 %327, %v312
        %v329 = vpop.permute.xlu0 %328
        %330 = vset.pattern.permute.xlu0 0
        %331 = vperm.xlu0 %330, %v313
        %v332 = vpop.permute.xlu0 %331
        %vm333 = vcmp.eq.s32.totalorder %v326, %v329
        %vm334 = vcmp.eq.s32.totalorder %v326, %v332
        %v335 = vld [vmem:[%s284] sm:$0xff]
        %v336 = vld [vmem:[%s284 + $0x8] sm:$0xff]
        %v337 = vsel %vm333, %v335, 0.0
        %v338 = vsel %vm334, %v336, 0.0
        %339 = vadd.xlane.f32.xlu0 %v337
        %v340 = vpop.xlane.xlu0 %339
        %341 = vadd.xlane.f32.xlu0 %v338
        %v342 = vpop.xlane.xlu0 %341
        %343 = vmax.xlane.f32.xlu0 %v335
        %v344 = vpop.xlane.xlu0 %343
        %345 = vmax.xlane.f32.xlu0 %v336
        %v346 = vpop.xlane.xlu0 %345
        %v347 = vsub.f32 %v335, %v344
        %v348 = vsub.f32 %v336, %v346
        %v349 = vmul.f32 %v347, 1.442695
        %v350 = vpow.pop %v349
        %v351 = vmul.f32 %v348, 1.442695
        %v352 = vpow.pop %v351
        %353 = vadd.xlane.f32.xlu0 %v350
        %v354 = vpop.xlane.xlu0 %353
        %355 = vadd.xlane.f32.xlu0 %v352
        %v356 = vpop.xlane.xlu0 %355
        %v357 = vlog2.pop %v354
        %v358 = vmul.f32 %v357, 0.6931472
        %v359 = vlog2.pop %v356
        %v360 = vmul.f32 %v359, 0.6931472
        %v361 = vadd.f32 %v344, %v358
        %v362 = vadd.f32 %v346, %v360
        %v363 = vsub.f32 %v361, %v340
        %v364 = vsub.f32 %v362, %v342
        %v365 = vsel %vm323, %v363, 0.0
        %v366 = vsel %vm324, %v364, 0.0
        %v367 = vld [vmem:[#allocation4] sm:$0x1]
        %v368 = vadd.f32 %v365, %v366
        %v369 = vrot.slane %v368, 4
        %v370 = vadd.f32 %v368, %v369
        %v371 = vrot.slane %v370, 2
        %v372 = vadd.f32 %v370, %v371
        %v373 = vrot.slane %v372, 1
        %v374 = vadd.f32 %v372, %v373
        %v375 = vadd.f32 %v367, %v374
        %vm376 = vcmask 0
        %377 = vst.msk [vmem:[#allocation4] sm:$0x1] %vm376, %v375
        %v378 = vld [vmem:[%s290] sm:$0xff]
        %v379 = vld [vmem:[%s290 + $0x8] sm:$0xff]
        %v380 = vsel %vm333, %v378, 0.0
        %v381 = vsel %vm334, %v379, 0.0
        %382 = vadd.xlane.f32.xlu0 %v380
        %v383 = vpop.xlane.xlu0 %382
        %384 = vadd.xlane.f32.xlu0 %v381
        %v385 = vpop.xlane.xlu0 %384
        %386 = vmax.xlane.f32.xlu0 %v378
        %v387 = vpop.xlane.xlu0 %386
        %388 = vmax.xlane.f32.xlu0 %v379
        %v389 = vpop.xlane.xlu0 %388
        %v390 = vsub.f32 %v378, %v387
        %v391 = vsub.f32 %v379, %v389
        %v392 = vmul.f32 %v390, 1.442695
        %v393 = vpow.pop %v392
        %v394 = vmul.f32 %v391, 1.442695
        %v395 = vpow.pop %v394
        %396 = vadd.xlane.f32.xlu0 %v393
        %v397 = vpop.xlane.xlu0 %396
        %398 = vadd.xlane.f32.xlu0 %v395
        %v399 = vpop.xlane.xlu0 %398
        %v400 = vlog2.pop %v397
        %v401 = vmul.f32 %v400, 0.6931472
        %v402 = vlog2.pop %v399
        %v403 = vmul.f32 %v402, 0.6931472
        %v404 = vadd.f32 %v387, %v401
        %v405 = vadd.f32 %v389, %v403
        %v406 = vsub.f32 %v404, %v383
        %v407 = vsub.f32 %v405, %v385
        %v408 = vsel %vm323, %v406, 0.0
        %v409 = vsel %vm324, %v407, 0.0
        %v410 = vld [vmem:[#allocation6] sm:$0x1]
        %v411 = vadd.f32 %v408, %v409
        %v412 = vrot.slane %v411, 4
        %v413 = vadd.f32 %v411, %v412
        %v414 = vrot.slane %v413, 2
        %v415 = vadd.f32 %v413, %v414
        %v416 = vrot.slane %v415, 1
        %v417 = vadd.f32 %v415, %v416
        %v418 = vadd.f32 %v410, %v417
        %419 = vst.msk [vmem:[#allocation6] sm:$0x1] %vm376, %v418
        %v420 = vld [vmem:[%s296] sm:$0xff]
        %v421 = vld [vmem:[%s296 + $0x8] sm:$0xff]
        %v422 = vsel %vm333, %v420, 0.0
        %v423 = vsel %vm334, %v421, 0.0
        %424 = vadd.xlane.f32.xlu0 %v422
        %v425 = vpop.xlane.xlu0 %424
        %426 = vadd.xlane.f32.xlu0 %v423
        %v427 = vpop.xlane.xlu0 %426
        %428 = vmax.xlane.f32.xlu0 %v420
        %v429 = vpop.xlane.xlu0 %428
        %430 = vmax.xlane.f32.xlu0 %v421
        %v431 = vpop.xlane.xlu0 %430
        %v432 = vsub.f32 %v420, %v429
        %v433 = vsub.f32 %v421, %v431
        %v434 = vmul.f32 %v432, 1.442695
        %v435 = vpow.pop %v434
        %v436 = vmul.f32 %v433, 1.442695
        %v437 = vpow.pop %v436
        %438 = vadd.xlane.f32.xlu0 %v435
        %v439 = vpop.xlane.xlu0 %438
        %440 = vadd.xlane.f32.xlu0 %v437
        %v441 = vpop.xlane.xlu0 %440
        %v442 = vlog2.pop %v439
        %v443 = vmul.f32 %v442, 0.6931472
        %v444 = vlog2.pop %v441
        %v445 = vmul.f32 %v444, 0.6931472
        %v446 = vadd.f32 %v429, %v443
        %v447 = vadd.f32 %v431, %v445
        %v448 = vsub.f32 %v446, %v425
        %v449 = vsub.f32 %v447, %v427
        %v450 = vsel %vm323, %v448, 0.0
        %v451 = vsel %vm324, %v449, 0.0
        %v452 = vld [vmem:[#allocation8] sm:$0x1]
        %v453 = vadd.f32 %v450, %v451
        %v454 = vrot.slane %v453, 4
        %v455 = vadd.f32 %v453, %v454
        %v456 = vrot.slane %v455, 2
        %v457 = vadd.f32 %v455, %v456
        %v458 = vrot.slane %v457, 1
        %v459 = vadd.f32 %v457, %v458
        %v460 = vadd.f32 %v452, %v459
        %461 = vst.msk [vmem:[#allocation8] sm:$0x1] %vm376, %v460
        %p462 = scmp.eq.s32.totalorder %s22, 3
        // Predicated region
        $region41: #{_forward_impl.1} parent=35 // pred_check
          %p463 = pneg %p462
        $region42: #{_forward_impl.1} parent=35 // pred_check_branch
          %465 = sbr.rel (%p463) target = $region44
        $region43: #{_forward_impl.1} parent=35 // pred_region
          %s466 = scvt.s32.f32 %s314
          %v467 = vstv %s466
          %v468 = vrcp.pop %v467
          %s469 = vtos %v468
          %v470 = vld [vmem:[#allocation4] sm:$0x1]
          %v471 = vstv %s469
          %v472 = vmul.f32 %v470, %v471
          %473 = vst.msk [vmem:[#allocation4] sm:$0x1] %vm376, %v472
          %v474 = vld [vmem:[#allocation6] sm:$0x1]
          %v475 = vmul.f32 %v474, %v471
          %476 = vst.msk [vmem:[#allocation6] sm:$0x1] %vm376, %v475
          %v477 = vld [vmem:[#allocation8] sm:$0x1]
          %v478 = vmul.f32 %v477, %v471
          %479 = vst.msk [vmem:[#allocation8] sm:$0x1] %vm376, %v478
        $region44: #{_forward_impl.1} parent=35 // pred_fallthru
          _
        // Predicated region
        $region45: #{_forward_impl.1} parent=35 // pred_check
          %p480 = pneg %p139
        $region46: #{_forward_impl.1} parent=35 // pred_check_branch
          %482 = sbr.rel (%p480) target = $region48
        $region47: #{_forward_impl.1} parent=35 // pred_region
          %s484 = ssub.s32 16, 16
          %485 = vsyncadd [#allocation5], %s484
          %s487 = sshll.u32 [#allocation4], 4
          %s488 = int_to_ptr.vmem [resolvable:$true] %s487
          %490 = dma.vmem_to_hbm [thread:$0]  %s488, 16, %s5, [#allocation5]
        $region48: #{_forward_impl.1} parent=35 // pred_fallthru
          _
        // Predicated region
        $region49: #{_forward_impl.1} parent=35 // pred_check
          %p491 = pneg %p160
        $region50: #{_forward_impl.1} parent=35 // pred_check_branch
          %493 = sbr.rel (%p491) target = $region52
        $region51: #{_forward_impl.1} parent=35 // pred_region
          %s495 = ssub.s32 16, 16
          %496 = vsyncadd [#allocation7], %s495
          %s498 = sshll.u32 [#allocation6], 4
          %s499 = int_to_ptr.vmem [resolvable:$true] %s498
          %501 = dma.vmem_to_hbm [thread:$0]  %s499, 16, %s6, [#allocation7]
        $region52: #{_forward_impl.1} parent=35 // pred_fallthru
          _
        // Predicated region
        $region53: #{_forward_impl.1} parent=35 // pred_check
          %p502 = pneg %p181
        $region54: #{_forward_impl.1} parent=35 // pred_check_branch
          %504 = sbr.rel (%p502) target = $region56
        $region55: #{_forward_impl.1} parent=35 // pred_region
          %s506 = ssub.s32 16, 16
          %507 = vsyncadd [#allocation7], %s506
          %s509 = sshll.u32 [#allocation8], 4
          %s510 = int_to_ptr.vmem [resolvable:$true] %s509
          %512 = dma.vmem_to_hbm [thread:$0]  %s510, 16, %s7, [#allocation7]
        $region56: #{_forward_impl.1} parent=35 // pred_fallthru
          _
        // Predicated region
        $region57: #{_forward_impl.1} parent=35 // pred_check
          %p513 = pneg %p139
        $region58: #{_forward_impl.1} parent=35 // pred_check_branch
          %515 = sbr.rel (%p513) target = $region60
        $region59: #{_forward_impl.1} parent=35 // pred_region
          %516 = dma.done [#allocation5], 16
        $region60: #{_forward_impl.1} parent=35 // pred_fallthru
          _
        // Predicated region
        $region61: #{_forward_impl.1} parent=35 // pred_check
          %p517 = pneg %p160
        $region62: #{_forward_impl.1} parent=35 // pred_check_branch
          %519 = sbr.rel (%p517) target = $region64
        $region63: #{_forward_impl.1} parent=35 // pred_region
          %520 = dma.done [#allocation7], 16
        $region64: #{_forward_impl.1} parent=35 // pred_fallthru
          _
        // Predicated region
        $region65: #{_forward_impl.1} parent=35 // pred_check
          %p521 = pneg %p181
        $region66: #{_forward_impl.1} parent=35 // pred_check_branch
          %523 = sbr.rel (%p521) target = $region68
        $region67: #{_forward_impl.1} parent=35 // pred_region
          %524 = dma.done [#allocation7], 16
        $region68: #{_forward_impl.1} parent=35 // pred_fallthru
          _
      $region36: #{_forward_impl.1} parent=5 // pred_fallthru
        _
      %p525 = scmp.le.s32.totalorder 2, %s17
      // Predicated region
      $region69: #{_forward_impl.1} parent=5 // pred_check
        %p526 = pneg %p525
      $region70: #{_forward_impl.1} parent=5 // pred_check_branch
        %528 = sbr.rel (%p526) target = $region72
      $region71: #{_forward_impl.1} parent=5 // pred_region
        %s529 = ssub.s32 %s17, 2
      $region72: #{_forward_impl.1} parent=5 // pred_fallthru
        _
    $region6: #{_forward_impl.1} parent=1 // loop_footer
      %s21 = sadd.s32 1, %s17
    $region7: #{_forward_impl.1} parent=1 // loop_footer_branch
      %16 = sbr.rel target = $region3
    $region8: #{_forward_impl.1} parent=1 // loop_exit
      _
    %530 = vsyncpa [#allocation5], 1
    %s531 = scalar_lea.sflag [#allocation5], 1
    %532 = vsyncpa %s531, 1
    %533 = vsyncpa [#allocation7], 1

</llo_original>
